<compile_context>
chip_gen: v7x
topology: tpu7x:2x2x1
jax: 0.10.0
libtpu: 0.0.40
codegen_flags: <defaults>
</compile_context>

<pallas_src>
import jax
import jax.numpy as jnp
from jax import lax
from jax.experimental import pallas as pl
from jax.experimental.pallas import tpu as pltpu

_LANE = 128
_SUBLANE = 8


def _se_kernel(state_ref, action_ref, w_ref, o_ref):
    # state_ref : [Ds,  tb]      (batch on the lane axis)
    # action_ref: [Da,  tb]
    # w_ref     : [Dout, Ds+Da]  -- native PyTorch nn.Linear layout, no transpose
    # o_ref     : [Dout, tb]
    x = jnp.concatenate([state_ref[...], action_ref[...]], axis=0)   # [Din, tb] sublane concat
    # y^T = W @ x^T : one K = Din MXU contraction (contract W dim 1 with x dim 0).
    y = lax.dot_general(
        w_ref[...], x, (((1,), (0,)), ((), ())),
        preferred_element_type=jnp.float32,
    )
    o_ref[...] = y.astype(o_ref.dtype)


def _round_up(x, m):
    return pl.cdiv(x, m) * m


def _choose_batch_tile(batch, max_tile=4096):
    """Lane-axis (batch) tile: large to amortize ~0.35us/grid-step; >=2 steps when possible."""
    b128 = _round_up(batch, _LANE)
    tb = min(max_tile, b128)
    if b128 >= 2 * _LANE and tb >= b128:
        # Split a single-block batch into >=2 grid steps so v7x's two TensorCores both get work.
        tb = _round_up(pl.cdiv(b128, 2), _LANE)
    grid_b = pl.cdiv(b128, tb)
    return tb, grid_b


def system_estimator_forward_t(state_t, action_t, weight):
    """Lane-dense SystemEstimator forward:  returns y^T = W @ [state; action]^T.

    state_t : [dim_state,  B]
    action_t: [dim_action, B]
    weight  : [dim_state, dim_state + dim_action]   (native PyTorch nn.Linear layout)
    returns : [dim_state,  B]
    """
    ds, B = state_t.shape
    da, Ba = action_t.shape
    dout, din = weight.shape
    assert Ba == B, "state/action batch mismatch"
    assert din == ds + da and dout == ds, "weight shape inconsistent with state/action"
    assert state_t.dtype == action_t.dtype == weight.dtype, "dtypes must match (no silent promotion)"

    tb, grid_b = _choose_batch_tile(B)
    b_pad = tb * grid_b
    if b_pad != B:
        state_t = jnp.pad(state_t, ((0, 0), (0, b_pad - B)))
        action_t = jnp.pad(action_t, ((0, 0), (0, b_pad - B)))

    itemsize = jnp.dtype(state_t.dtype).itemsize
    sub = lambda d: _round_up(d, _SUBLANE)
    cost = pl.CostEstimate(
        flops=2 * B * din * dout,
        transcendentals=0,
        bytes_accessed=(b_pad * (sub(ds) + sub(da) + sub(dout))
                        + sub(dout) * _round_up(din, _LANE)) * itemsize,
    )

    out = pl.pallas_call(
        _se_kernel,
        out_shape=jax.ShapeDtypeStruct((dout, b_pad), state_t.dtype),
        grid=(grid_b,),
        in_specs=[
            pl.BlockSpec((ds, tb), lambda i: (0, i)),
            pl.BlockSpec((da, tb), lambda i: (0, i)),
            # Constant index_map -> weight stays VMEM-resident across all grid steps.
            pl.BlockSpec((dout, din), lambda i: (0, 0)),
        ],
        out_specs=pl.BlockSpec((dout, tb), lambda i: (0, i)),
        compiler_params=pltpu.CompilerParams(
            dimension_semantics=("parallel",),   # batch tiles shard across v7x's 2 TCs
        ),
        cost_estimate=cost,
    )(state_t, action_t, weight)

    return out[:, :B] if b_pad != B else out


def system_estimator_forward(state, action, weight, *, min_pallas_batch=1024):
    """Module-faithful API:  y = cat([state, action], dim=1) @ W.T  -> [B, dim_state].

    Small batches are pure launch/DMA overhead as a custom kernel, so they fall back to
    the plain jnp expression (XLA fuses it into the surrounding controller jit); large
    rollout batches run the lane-dense Pallas kernel on the transposed layout.
    """
    B, ds = state.shape
    _, da = action.shape
    dout, din = weight.shape
    assert din == ds + da and dout == ds, "weight shape inconsistent with state/action"

    if B < min_pallas_batch:
        ws = weight[:, :ds]
        wa = weight[:, ds:]
        return state @ ws.T + action @ wa.T

    out_t = system_estimator_forward_t(state.T, action.T, weight)
    return out_t.T


if __name__ == "__main__":
    key = jax.random.PRNGKey(0)
    k_s, k_a, k_w, k_s2, k_a2, k_s3, k_a3 = jax.random.split(key, 7)

    dim_state, dim_action = 8, 4
    dtype = jnp.float32
    HIGH = jax.lax.Precision.HIGHEST

    # ---- module-faithful small case (B=8, zero-initialized weight as in __init__) ----
    B = 8
    state = jax.random.normal(k_s, (B, dim_state), dtype=dtype)
    action = jax.random.normal(k_a, (B, dim_action), dtype=dtype)
    w_zero = jnp.zeros((dim_state, dim_state + dim_action), dtype=dtype)

    out = jax.block_until_ready(system_estimator_forward(state, action, w_zero))
    ref = jnp.concatenate([state, action], axis=1) @ w_zero.T
    assert out.shape == (B, dim_state)
    assert jnp.allclose(out, ref, atol=1e-6), "mismatch with zero-weight reference"

    w_rand = jax.random.normal(k_w, (dim_state, dim_state + dim_action), dtype=dtype)
    out_b = jax.block_until_ready(system_estimator_forward(state, action, w_rand))
    ref_b = jnp.matmul(jnp.concatenate([state, action], axis=1), w_rand.T, precision=HIGH)
    assert jnp.allclose(out_b, ref_b, atol=1e-5, rtol=1e-5), "small-batch bypass mismatch"

    # ---- force the Pallas path on a ragged batch (padding + 2 grid steps exercised) ----
    B2 = 300
    state2 = jax.random.normal(k_s2, (B2, dim_state), dtype=dtype)
    action2 = jax.random.normal(k_a2, (B2, dim_action), dtype=dtype)
    out2 = jax.block_until_ready(
        system_estimator_forward(state2, action2, w_rand, min_pallas_batch=0)
    )
    ref2 = jnp.matmul(jnp.concatenate([state2, action2], axis=1), w_rand.T, precision=HIGH)
    assert out2.shape == (B2, dim_state)
    assert jnp.allclose(out2, ref2, atol=1e-4, rtol=1e-5), "ragged-batch Pallas mismatch"

    # ---- large batched rollout in the native lane-dense (transposed) layout ----
    B3 = 4096   # -> tb=2048, grid=(2,), parallel batch axis, weight VMEM-resident
    state3_t = jax.random.normal(k_s3, (dim_state, B3), dtype=dtype)
    action3_t = jax.random.normal(k_a3, (dim_action, B3), dtype=dtype)
    out3_t = jax.block_until_ready(system_estimator_forward_t(state3_t, action3_t, w_rand))
    ref3_t = jnp.matmul(w_rand, jnp.concatenate([state3_t, action3_t], axis=0), precision=HIGH)
    assert out3_t.shape == (dim_state, B3)
    assert jnp.allclose(out3_t, ref3_t, atol=1e-4, rtol=1e-5), "batched (transposed) mismatch"

    # TODO(synk): reset()/update()/SGD step and the numpy predict/predicts helpers are
    # host-side training/bookkeeping utilities, not part of the forward pass, and are not
    # kernelized.
    print("KERNEL_OK")
</pallas_src>

<mosaic_0001>
module attributes {stable_mosaic.version = 11 : i64} {
  func.func @_se_kernel(%arg0: i32, %arg1: memref<8x256xf32, #tpu.memory_space<vmem>>, %arg2: memref<4x256xf32, #tpu.memory_space<vmem>>, %arg3: memref<8x12xf32, #tpu.memory_space<vmem>>, %arg4: memref<8x256xf32, #tpu.memory_space<vmem>>) attributes {dimension_semantics = [#tpu.dimension_semantics<parallel>], iteration_bounds = array<i64: 2>, scalar_prefetch = 0 : i64, scratch_operands = 0 : i64, tpu.core_type = #tpu.core_type<tc>, window_params = [{transform_indices = @transform_0, window_bounds = array<i64: 8, 256>}, {transform_indices = @transform_1, window_bounds = array<i64: 4, 256>}, {pipeline_mode = #tpu.pipeline_mode<synchronous>, transform_indices = @transform_2, window_bounds = array<i64: 8, 12>}, {transform_indices = @transform_3, window_bounds = array<i64: 8, 256>}]} {
    %c0 = arith.constant 0 : index
    %c0_0 = arith.constant 0 : index
    %0 = vector.load %arg1[%c0, %c0_0] : memref<8x256xf32, #tpu.memory_space<vmem>>, vector<8x256xf32>
    %c0_1 = arith.constant 0 : index
    %c0_2 = arith.constant 0 : index
    %1 = vector.load %arg2[%c0_1, %c0_2] : memref<4x256xf32, #tpu.memory_space<vmem>>, vector<4x256xf32>
    %2 = tpu.concatenate %0, %1 in 0 : vector<8x256xf32>, vector<4x256xf32> -> vector<12x256xf32>
    %c0_3 = arith.constant 0 : index
    %c0_4 = arith.constant 0 : index
    %3 = vector.load %arg3[%c0_3, %c0_4] : memref<8x12xf32, #tpu.memory_space<vmem>>, vector<8x12xf32>
    %cst = arith.constant dense<0.000000e+00> : vector<8x256xf32>
    %4 = tpu.matmul %3, %2, %cst {dimension_numbers = #tpu.dot_dimension_numbers<[1], [0], [0], [1], [0, 0, 1, 1], [], []>} : vector<8x12xf32>, vector<12x256xf32>, vector<8x256xf32> -> vector<8x256xf32>
    %c0_5 = arith.constant 0 : index
    %c0_6 = arith.constant 0 : index
    %5 = vector.load %arg4[%c0_5, %c0_6] : memref<8x256xf32, #tpu.memory_space<vmem>>, vector<8x256xf32>
    tpu.vector_store %arg4[%c0_5, %c0_6], %4 {strides = array<i32>} : memref<8x256xf32, #tpu.memory_space<vmem>>, vector<8x256xf32>,
    return
  }
  func.func @transform_0(%arg0: i32) -> (i32, i32) {
    %c0_i32 = arith.constant 0 : i32
    %c0_i32_0 = arith.constant 0 : i32
    return %c0_i32, %arg0 : i32, i32
  }
  func.func @transform_1(%arg0: i32) -> (i32, i32) {
    %c0_i32 = arith.constant 0 : i32
    %c0_i32_0 = arith.constant 0 : i32
    return %c0_i32, %arg0 : i32, i32
  }
  func.func @transform_2(%arg0: i32) -> (i32, i32) {
    %c0_i32 = arith.constant 0 : i32
    %c0_i32_0 = arith.constant 0 : i32
    %c0_i32_1 = arith.constant 0 : i32
    return %c0_i32, %c0_i32_0 : i32, i32
  }
  func.func @transform_3(%arg0: i32) -> (i32, i32) {
    %c0_i32 = arith.constant 0 : i32
    %c0_i32_0 = arith.constant 0 : i32
    return %c0_i32, %arg0 : i32, i32
  }
}

</mosaic_0001>

<llo_original>
// kernel: tpu_custom_call.1
$region0: #{tpu_custom_call.1}
  #allocation0 [shape = 'u32[]', space=smem, size = 0x4, offset = 0x4, fixed_abs, tag = 'smem constant byte address 0x4 - core index']
  #allocation1 [shape = 'u32[144,128]{1,0:T(1,128)}', space=vmem, size = 0x12000, scoped, tag = 'internal scratch']
  %s0 = inlined_call_operand.hbm [shape: f32[8,512], index: 0, kind: input, shape index: {}]
  %s1 = inlined_call_operand.hbm [shape: f32[4,512], index: 1, kind: input, shape index: {}]
  %s2 = inlined_call_operand.hbm [shape: f32[8,12], index: 2, kind: input, shape index: {}]
  %s3 = inlined_call_operand.hbm [shape: f32[8,512], index: 3, kind: output, shape index: {}]
  %s4 = sld [smem:[#allocation0]]
  $region57: #{tpu_custom_call.1} parent=0
    _
  %s6 = ssub.s32 1, %s4
  %s7 = scalar_select 0, %s6, %s4
  $region1: #{tpu_custom_call.1} parent=0
    #allocation2 [shape = 'u8[16384]{0}', space=vmem, size = 0x4000, scoped, tag = 'input window, operand 0']
    #allocation3 [shape = 's32[2]{0}', space=sflag, size = 0x8, scoped, tag = 'scoped memory for tpu_custom_call.1']
    #allocation4 [shape = 's32[2]{0}', space=sflag, size = 0x8, scoped, tag = 'scoped memory for tpu_custom_call.1']
    #allocation5 [shape = 'u8[8192]{0}', space=vmem, size = 0x2000, scoped, tag = 'input window, operand 1']
    #allocation6 [shape = 's32[2]{0}', space=sflag, size = 0x8, scoped, tag = 'scoped memory for tpu_custom_call.1']
    #allocation7 [shape = 'u8[4096]{0}', space=vmem, size = 0x1000, scoped, tag = 'input window, operand 2, single buffered']
    #allocation8 [shape = 'u8[16384]{0}', space=vmem, size = 0x4000, scoped, tag = 'output window, operand 0']
    %8 = vsyncpa [#allocation3], 0
    %s9 = scalar_lea.sflag [#allocation3], 1
    %10 = vsyncpa %s9, 0
    %11 = vsyncpa [#allocation6], 0
    %s12 = scalar_lea.sflag [#allocation6], 1
    %13 = vsyncpa %s12, 0
    %14 = vsyncpa [#allocation4], 0
    %s15 = scalar_lea.sflag [#allocation4], 1
    %16 = vsyncpa %s15, 0
    loop: start=0, step=1, limit=4
    $region2: #{tpu_custom_call.1} parent=1 // loop_pre_header
      _
    $region3: #{tpu_custom_call.1} parent=1 // loop_header
      %s18 = sphi 0, %s22
      %p19 = scmp.ge.s32.totalorder %s18, 4
      %s28 = sphi 0, %s30
      %s31 = sphi 0, %s28
      %s32 = sphi 0, %s31
      %s48 = sphi 0, %s32
      %s54 = sphi 0, %s56
      %s57 = sphi 0, %s54
      %s58 = sphi 0, %s57
      %s74 = sphi 0, %s58
      %s78 = sphi 0, %s78
      %s80 = sphi 0, %s78
      %s81 = sphi 0, %s80
      %s95 = sphi 0, %s81
      %s101 = sphi 0, %s103
      %s104 = sphi 0, %s101
      %s105 = sphi 0, %s104
      %s121 = sphi 0, %s105
    $region4: #{tpu_custom_call.1} parent=1 // loop_header_branch
      %21 = sbr.rel (%p19) target = $region8
    $region5: #{tpu_custom_call.1} parent=1 // loop_body
      %s23 = ssub.s32 %s18, 1
      %s24 = ssub.s32 %s18, 2
      %s25 = sadd.s32 %s18, 1
      %s26 = ssub.s32 %s18, %s25
      %p27 = scmp.eq.s32.totalorder %s26, 0
      %s29 = sadd.s32 %s28, 1
      %s30 = scalar_select %p27, %s28, %s29
      %p33 = pneg %p27
      %p34 = scmp.eq.s32.totalorder %s18, 1
      %p35 = por %p33, %p34
      %p36 = scmp.ne.s32.totalorder %s28, %s31
      %p37 = scmp.eq.s32.totalorder %s18, 0
      %p38 = por %p36, %p37
      %p39 = scmp.ne.s32.totalorder %s28, %s31
      %p40 = scmp.eq.s32.totalorder %s23, 1
      %p41 = por %p39, %p40
      %p42 = scmp.ne.s32.totalorder %s31, %s32
      %p43 = scmp.eq.s32.totalorder %s23, 0
      %p44 = por %p42, %p43
      %p45 = scmp.ne.s32.totalorder %s31, %s32
      %p46 = scmp.eq.s32.totalorder %s24, 1
      %p47 = por %p45, %p46
      %p49 = scmp.ne.s32.totalorder %s32, %s48
      %p50 = scmp.eq.s32.totalorder %s24, 0
      %p51 = por %p49, %p50
      %s52 = ssub.s32 %s18, %s25
      %p53 = scmp.eq.s32.totalorder %s52, 0
      %s55 = sadd.s32 %s54, 1
      %s56 = scalar_select %p53, %s54, %s55
      %p59 = pneg %p53
      %p60 = scmp.eq.s32.totalorder %s18, 1
      %p61 = por %p59, %p60
      %p62 = scmp.ne.s32.totalorder %s54, %s57
      %p63 = scmp.eq.s32.totalorder %s18, 0
      %p64 = por %p62, %p63
      %p65 = scmp.ne.s32.totalorder %s54, %s57
      %p66 = scmp.eq.s32.totalorder %s23, 1
      %p67 = por %p65, %p66
      %p68 = scmp.ne.s32.totalorder %s57, %s58
      %p69 = scmp.eq.s32.totalorder %s23, 0
      %p70 = por %p68, %p69
      %p71 = scmp.ne.s32.totalorder %s57, %s58
      %p72 = scmp.eq.s32.totalorder %s24, 1
      %p73 = por %p71, %p72
      %p75 = scmp.ne.s32.totalorder %s58, %s74
      %p76 = scmp.eq.s32.totalorder %s24, 0
      %p77 = por %p75, %p76
      %s79 = sadd.s32 %s78, 1
      %p82 = scmp.eq.s32.totalorder %s18, 1
      %p83 = scmp.ne.s32.totalorder %s78, %s80
      %p84 = scmp.eq.s32.totalorder %s18, 0
      %p85 = por %p83, %p84
      %p86 = scmp.ne.s32.totalorder %s78, %s80
      %p87 = scmp.eq.s32.totalorder %s23, 1
      %p88 = por %p86, %p87
      %p89 = scmp.ne.s32.totalorder %s80, %s81
      %p90 = scmp.eq.s32.totalorder %s23, 0
      %p91 = por %p89, %p90
      %p92 = scmp.ne.s32.totalorder %s80, %s81
      %p93 = scmp.eq.s32.totalorder %s24, 1
      %p94 = por %p92, %p93
      %p96 = scmp.ne.s32.totalorder %s81, %s95
      %p97 = scmp.eq.s32.totalorder %s24, 0
      %p98 = por %p96, %p97
      %s99 = ssub.s32 %s18, %s25
      %p100 = scmp.eq.s32.totalorder %s99, 0
      %s102 = sadd.s32 %s101, 1
      %s103 = scalar_select %p100, %s101, %s102
      %p106 = pneg %p100
      %p107 = scmp.eq.s32.totalorder %s18, 1
      %p108 = por %p106, %p107
      %p109 = scmp.ne.s32.totalorder %s101, %s104
      %p110 = scmp.eq.s32.totalorder %s18, 0
      %p111 = por %p109, %p110
      %p112 = scmp.ne.s32.totalorder %s101, %s104
      %p113 = scmp.eq.s32.totalorder %s23, 1
      %p114 = por %p112, %p113
      %p115 = scmp.ne.s32.totalorder %s104, %s105
      %p116 = scmp.eq.s32.totalorder %s23, 0
      %p117 = por %p115, %p116
      %p118 = scmp.ne.s32.totalorder %s104, %s105
      %p119 = scmp.eq.s32.totalorder %s24, 1
      %p120 = por %p118, %p119
      %p122 = scmp.ne.s32.totalorder %s105, %s121
      %p123 = scmp.eq.s32.totalorder %s24, 0
      %p124 = por %p122, %p123
      %p125 = scmp.le.s32.totalorder 1, %s18
      %p126 = scmp.lt.s32.totalorder %s18, 3
      %p127 = pnand %p125, %p126
      %p128 = pneg %p127
      // Predicated region
      $region9: #{tpu_custom_call.1} parent=5 // pred_check
        _
      $region10: #{tpu_custom_call.1} parent=5 // pred_check_branch
        %130 = sbr.rel (%p127) target = $region12
      $region11: #{tpu_custom_call.1} parent=5 // pred_region
        %s131 = ssub.s32 %s18, 1
        // Predicated region
        $region13: #{tpu_custom_call.1} parent=11 // pred_check
          %p132 = pneg %p91
        $region14: #{tpu_custom_call.1} parent=11 // pred_check_branch
          %134 = sbr.rel (%p132) target = $region16
        $region15: #{tpu_custom_call.1} parent=11 // pred_region
          %s136 = ssub.s32 128, 128
          %137 = vsyncadd [#allocation6], %s136
          %s139 = sshll.u32 [#allocation7], 4
          %s140 = int_to_ptr.vmem [resolvable:$true] %s139
          %142 = dma.hbm_to_vmem [thread:$0]  %s2, 128, %s140, [#allocation6]
        $region16: #{tpu_custom_call.1} parent=11 // pred_fallthru
          _
      $region12: #{tpu_custom_call.1} parent=5 // pred_fallthru
        _
      %p143 = scmp.lt.s32.totalorder %s18, 2
      // Predicated region
      $region17: #{tpu_custom_call.1} parent=5 // pred_check
        %p144 = pneg %p143
      $region18: #{tpu_custom_call.1} parent=5 // pred_check_branch
        %146 = sbr.rel (%p144) target = $region20
      $region19: #{tpu_custom_call.1} parent=5 // pred_region
        // Predicated region
        $region21: #{tpu_custom_call.1} parent=19 // pred_check
          %p147 = pneg %p38
        $region22: #{tpu_custom_call.1} parent=19 // pred_check_branch
          %149 = sbr.rel (%p147) target = $region24
        $region23: #{tpu_custom_call.1} parent=19 // pred_region
          %s150 = sand.u32 %s28, 1
          %s151 = scalar_lea.sflag [#allocation3], %s150
          %s152 = sand.u32 %s28, 1
          %s153 = smul.addr %s152, 16
          %s154 = scalar_lea.vmem [#allocation2], %s153
          %s155 = smul.u32 2, %s18
          %s157 = ssub.s32 256, 256
          %158 = vsyncadd %s151, %s157
          %s159 = smul.addr %s155, 128
          %s160 = scalar_lea.hbm %s0, %s159
          %s162 = sshll.u32 %s154, 4
          %s163 = int_to_ptr.vmem [resolvable:$true] %s162
          %165 = dma.hbm_to_vmem [thread:$0]  %s160, 256, %s163, %s151
        $region24: #{tpu_custom_call.1} parent=19 // pred_fallthru
          _
        // Predicated region
        $region25: #{tpu_custom_call.1} parent=19 // pred_check
          %p166 = pneg %p64
        $region26: #{tpu_custom_call.1} parent=19 // pred_check_branch
          %168 = sbr.rel (%p166) target = $region28
        $region27: #{tpu_custom_call.1} parent=19 // pred_region
          %s169 = sand.u32 %s18, 1
          %s170 = scalar_lea.sflag [#allocation6], %s169
          %s171 = sand.u32 %s54, 1
          %s172 = smul.addr %s171, 8
          %s173 = scalar_lea.vmem [#allocation5], %s172
          %s174 = smul.u32 2, %s18
          %s176 = ssub.s32 128, 128
          %177 = vsyncadd %s170, %s176
          %s178 = smul.addr %s174, 64
          %s179 = scalar_lea.hbm %s1, %s178
          %s181 = sshll.u32 %s173, 4
          %s182 = int_to_ptr.vmem [resolvable:$true] %s181
          %184 = dma.hbm_to_vmem [thread:$0]  %s179, 128, %s182, %s170
        $region28: #{tpu_custom_call.1} parent=19 // pred_fallthru
          _
      $region20: #{tpu_custom_call.1} parent=5 // pred_fallthru
        _
      %p185 = scmp.le.s32.totalorder 1, %s18
      %p186 = scmp.lt.s32.totalorder %s18, 3
      %p187 = pnand %p185, %p186
      %p188 = pneg %p187
      // Predicated region
      $region29: #{tpu_custom_call.1} parent=5 // pred_check
        _
      $region30: #{tpu_custom_call.1} parent=5 // pred_check_branch
        %190 = sbr.rel (%p187) target = $region32
      $region31: #{tpu_custom_call.1} parent=5 // pred_region
        %s191 = ssub.s32 %s18, 1
        %s192 = sand.u32 %s31, 1
        %s193 = scalar_lea.sflag [#allocation3], %s192
        %s194 = sand.u32 %s31, 1
        %s195 = smul.addr %s194, 16
        %s196 = scalar_lea.vmem [#allocation2], %s195
        // Predicated region
        $region33: #{tpu_custom_call.1} parent=31 // pred_check
          %p197 = pneg %p44
        $region34: #{tpu_custom_call.1} parent=31 // pred_check_branch
          %199 = sbr.rel (%p197) target = $region36
        $region35: #{tpu_custom_call.1} parent=31 // pred_region
          %200 = dma.done %s193, 256
        $region36: #{tpu_custom_call.1} parent=31 // pred_fallthru
          _
        %s201 = sand.u32 %s23, 1
        %s202 = scalar_lea.sflag [#allocation6], %s201
        %s203 = sand.u32 %s57, 1
        %s204 = smul.addr %s203, 8
        %s205 = scalar_lea.vmem [#allocation5], %s204
        // Predicated region
        $region37: #{tpu_custom_call.1} parent=31 // pred_check
          %p206 = pneg %p70
        $region38: #{tpu_custom_call.1} parent=31 // pred_check_branch
          %208 = sbr.rel (%p206) target = $region40
        $region39: #{tpu_custom_call.1} parent=31 // pred_region
          %209 = dma.done %s202, 128
        $region40: #{tpu_custom_call.1} parent=31 // pred_fallthru
          _
        // Predicated region
        $region41: #{tpu_custom_call.1} parent=31 // pred_check
          %p210 = pneg %p91
        $region42: #{tpu_custom_call.1} parent=31 // pred_check_branch
          %212 = sbr.rel (%p210) target = $region44
        $region43: #{tpu_custom_call.1} parent=31 // pred_region
          %213 = dma.done [#allocation6], 128
        $region44: #{tpu_custom_call.1} parent=31 // pred_fallthru
          _
        %s214 = sand.u32 %s31, 1
        %s215 = scalar_lea.sflag [#allocation3], %s214
        %s216 = sand.u32 %s31, 1
        %s217 = smul.addr %s216, 16
        %s218 = scalar_lea.vmem [#allocation2], %s217
        %p219 = pneg %p44
        %p220 = pneg %p41
        %s221 = sand.u32 %s23, 1
        %s222 = scalar_lea.sflag [#allocation6], %s221
        %s223 = sand.u32 %s57, 1
        %s224 = smul.addr %s223, 8
        %s225 = scalar_lea.vmem [#allocation5], %s224
        %p226 = pneg %p70
        %p227 = pneg %p67
        %p228 = pneg %p91
        %p229 = pneg %p88
        %p230 = pneg %p117
        %p231 = pneg %p114
        %s232 = sand.u32 %s104, 1
        %s233 = scalar_lea.sflag [#allocation4], %s232
        %s234 = sand.u32 %s104, 1
        %s235 = smul.addr %s234, 16
        %s236 = scalar_lea.vmem [#allocation8], %s235
        %s237 = smul.u32 2, %s23
        %s238 = smul.u32 2, %s23
        %s239 = smul.u32 2, %s23
        %v240 = vld [vmem:[%s196] sm:$0xff]
        %v241 = vld [vmem:[%s196 + $0x8] sm:$0xff]
        %v242 = vld [vmem:[%s205] sm:$0xff]
        %v244 = vcombine.high %v242, %v242
        %v245 = vld [vmem:[#allocation7] sm:$0xff]
        %vm246 = vcmask 97280
        %v248 = vsel %vm246, %v245, 0
        %vm250 = vcmask 1043456
        %v251 = vsel %vm250, %v242, 0
        %v253 = vsel %vm250, %v244, 0
        %255 = vmatprep.subr.mxu0 %v241
        %256 = vmatpush1.msra.mxu0 %v240
        %257 = vmatprep.subr.mxu0 %v253
        %258 = vmatpush1.msra.mxu0 %v251
        %259 = vmatprep.subr.mxu0 0.0
        %260 = vmatpush1.msra.mxu0 0.0
        %261 = vmatprep.subr.mxu0 0.0
        %262 = vmatpush1.msra.mxu0 0.0
        %263 = vmatprep.subr.mxu0 0.0
        %264 = vmatpush1.msra.mxu0 0.0
        %265 = vmatprep.subr.mxu0 0.0
        %266 = vmatpush1.msra.mxu0 0.0
        %267 = vmatprep.subr.mxu0 0.0
        %268 = vmatpush1.msra.mxu0 0.0
        %269 = vmatprep.subr.mxu0 0.0
        %270 = vmatpush1.msra.mxu0 0.0
        %271 = vmatprep.subr.mxu0 0.0
        %272 = vmatpush1.msra.mxu0 0.0
        %273 = vmatprep.subr.mxu0 0.0
        %274 = vmatpush1.msra.mxu0 0.0
        %275 = vmatprep.subr.mxu0 0.0
        %276 = vmatpush1.msra.mxu0 0.0
        %277 = vmatprep.subr.mxu0 0.0
        %278 = vmatpush1.msra.mxu0 0.0
        %279 = vmatprep.subr.mxu0 0.0
        %280 = vmatpush1.msra.mxu0 0.0
        %281 = vmatprep.subr.mxu0 0.0
        %282 = vmatpush1.msra.mxu0 0.0
        %283 = vmatprep.subr.mxu0 0.0
        %284 = vmatpush1.msra.mxu0 0.0
        %285 = vmatprep.subr.mxu0 0.0
        %286 = vmatpush1.msra.mxu0 0.0
        %287 = vmatprep.subr.mxu0 0.0
        %288 = vmatpush1.msra.mxu0 0.0
        %289 = vmatprep.subr.mxu0 0.0
        %290 = vmatpush1.msra.mxu0 0.0
        %291 = vmatprep.subr.mxu0 0.0
        %292 = vmatpush1.msra.mxu0 0.0
        %293 = vmatprep.subr.mxu0 0.0
        %294 = vmatpush1.msra.mxu0 0.0
        %295 = vmatprep.subr.mxu0 0.0
        %296 = vmatpush1.msra.mxu0 0.0
        %297 = vmatprep.subr.mxu0 0.0
        %298 = vmatpush1.msra.mxu0 0.0
        %299 = vmatprep.subr.mxu0 0.0
        %300 = vmatpush1.msra.mxu0 0.0
        %301 = vmatprep.subr.mxu0 0.0
        %302 = vmatpush1.msra.mxu0 0.0
        %303 = vmatprep.subr.mxu0 0.0
        %304 = vmatpush1.msra.mxu0 0.0
        %305 = vmatprep.subr.mxu0 0.0
        %306 = vmatpush1.msra.mxu0 0.0
        %307 = vmatprep.subr.mxu0 0.0
        %308 = vmatpush1.msra.mxu0 0.0
        %309 = vmatprep.subr.mxu0 0.0
        %310 = vmatpush1.msra.mxu0 0.0
        %311 = vmatprep.subr.mxu0 0.0
        %312 = vmatpush1.msra.mxu0 0.0
        %313 = vmatprep.subr.mxu0 0.0
        %314 = vmatpush1.msra.mxu0 0.0
        %315 = vmatprep.subr.mxu0 0.0
        %316 = vmatpush1.msra.mxu0 0.0
        %317 = vmatprep.subr.mxu0 0.0
        %318 = vmatpush1.msra.mxu0 0.0
        %319 = vmatprep.mubr.f32.mxu0 0.0
        %320 = vmatmul.mubr.f32.gmra.mrb[0].mxu0 %v248
        %v321 = vpop.f32.mrb[0].mxu0
        %v322 = vadd.f32 0.0, %v321
        %v323 = vpop.f32.mrb[0].mxu0
        %v324 = vadd.f32 0.0, %v323
        %325 = vdwg.mxu0
        %326 = vst [vmem:[%s236] sm:$0xff] %v322
        %327 = vst [vmem:[%s236 + $0x8] sm:$0xff] %v324
        %s328 = sand.u32 %s104, 1
        %s329 = scalar_lea.sflag [#allocation4], %s328
        %s330 = sand.u32 %s104, 1
        %s331 = smul.addr %s330, 16
        %s332 = scalar_lea.vmem [#allocation8], %s331
        // Predicated region
        $region45: #{tpu_custom_call.1} parent=31 // pred_check
          %p333 = pneg %p114
        $region46: #{tpu_custom_call.1} parent=31 // pred_check_branch
          %335 = sbr.rel (%p333) target = $region48
        $region47: #{tpu_custom_call.1} parent=31 // pred_region
          %s336 = smul.u32 2, %s23
          %s338 = ssub.s32 256, 256
          %339 = vsyncadd %s329, %s338
          %s340 = smul.addr %s336, 128
          %s341 = scalar_lea.hbm %s3, %s340
          %s343 = sshll.u32 %s332, 4
          %s344 = int_to_ptr.vmem [resolvable:$true] %s343
          %346 = dma.vmem_to_hbm [thread:$0]  %s344, 256, %s341, %s329
        $region48: #{tpu_custom_call.1} parent=31 // pred_fallthru
          _
      $region32: #{tpu_custom_call.1} parent=5 // pred_fallthru
        _
      %p347 = scmp.le.s32.totalorder 2, %s18
      // Predicated region
      $region49: #{tpu_custom_call.1} parent=5 // pred_check
        %p348 = pneg %p347
      $region50: #{tpu_custom_call.1} parent=5 // pred_check_branch
        %350 = sbr.rel (%p348) target = $region52
      $region51: #{tpu_custom_call.1} parent=5 // pred_region
        %s351 = ssub.s32 %s18, 2
        // Predicated region
        $region53: #{tpu_custom_call.1} parent=51 // pred_check
          %p352 = pneg %p120
        $region54: #{tpu_custom_call.1} parent=51 // pred_check_branch
          %354 = sbr.rel (%p352) target = $region56
        $region55: #{tpu_custom_call.1} parent=51 // pred_region
          %s355 = sand.u32 %s105, 1
          %s356 = scalar_lea.sflag [#allocation4], %s355
          %s357 = sand.u32 %s105, 1
          %s358 = smul.addr %s357, 16
          %s359 = scalar_lea.vmem [#allocation8], %s358
          %360 = dma.done %s356, 256
        $region56: #{tpu_custom_call.1} parent=51 // pred_fallthru
          _
      $region52: #{tpu_custom_call.1} parent=5 // pred_fallthru
        _
    $region6: #{tpu_custom_call.1} parent=1 // loop_footer
      %s22 = sadd.s32 1, %s18
    $region7: #{tpu_custom_call.1} parent=1 // loop_footer_branch
      %17 = sbr.rel target = $region3
    $region8: #{tpu_custom_call.1} parent=1 // loop_exit
      _
    %361 = vsyncpa [#allocation3], 1
    %s362 = scalar_lea.sflag [#allocation3], 1
    %363 = vsyncpa %s362, 1
    %364 = vsyncpa [#allocation6], 1
    %s365 = scalar_lea.sflag [#allocation6], 1
    %366 = vsyncpa %s365, 1
    %367 = vsyncpa [#allocation4], 1
    %s368 = scalar_lea.sflag [#allocation4], 1
    %369 = vsyncpa %s368, 1

</llo_original>
